<compile_context>
chip_gen: v6e
topology: v6e:2x2x1
jax: 0.10.0
libtpu: 0.0.40
codegen_flags: <defaults>
</compile_context>

<pallas_src>
import functools

import jax
import jax.numpy as jnp
from jax import lax
from jax.experimental import pallas as pl
from jax.experimental.pallas import tpu as pltpu

BOS_ID = 0
PAD_ID = 1
EOS_ID = 2
MASK_ID = 50264

# Practical SMEM ceiling for the two (n_pad,) int32 scalar-prefetch arrays.
_MAX_N_PAD = 128 * 1024


def _round_up(x, m):
    return ((x + m - 1) // m) * m


def _pick_tile(n_pad, target, prefer_multi):
    """Largest multiple of 1024 that divides n_pad and is <= target.

    If prefer_multi, back off so the axis gets >= 2 tiles when possible so the
    'parallel' query axis can feed both v7x TensorCores."""
    target = max(1024, target)
    divs = [1024 * k for k in range(1, n_pad // 1024 + 1)
            if n_pad % (1024 * k) == 0]
    fits = [d for d in divs if d <= target]
    best = max(fits) if fits else 1024
    if prefer_multi and n_pad // best < 2:
        multi = [d for d in fits if n_pad // d >= 2]
        if multi:
            best = max(multi)
    return best


def _labels_kernel(ids_sm, seq_sm, ovl_sm, ids_n_ref, seq_n_ref, out_ref, *,
                   tn, unroll):
    """out[n] |= OR over this j-step's m-range of
         (ids[n] == ids[m]) & (seq[n] != seq[m]).

    Query (n) positions: lane-dense (tm/128, 128) VMEM tile; the output tile
    is the resident OR-accumulator across the j (reduction) grid axis.
    m positions: read as scalars straight from SMEM (scalar-prefetched), so
    the m stream costs zero per-step DMA and no lane-padding waste.
    The seq term is skipped for (i, j) tile pairs whose position ranges cannot
    contain a same-sequence pair (host-precomputed `ovl_sm` table)."""
    i = pl.program_id(0)
    j = pl.program_id(1)
    nj = pl.num_programs(1)

    @pl.when(j == 0)
    def _():
        out_ref[...] = jnp.zeros_like(out_ref)

    ids_n = ids_n_ref[...]                        # (tm/128, 128) int32
    one = jnp.ones(ids_n.shape, jnp.int32)        # hoisted select constant
    base = j * tn
    steps = tn // unroll

    def run(with_seq, seq_n):
        def body(c, acc):
            idx0 = base + c * unroll
            hits = None
            for u in range(unroll):               # static unroll: LLO co-issues
                h = ids_n == ids_sm[idx0 + u]
                if with_seq:
                    h = jnp.logical_and(h, seq_n != seq_sm[idx0 + u])
                hits = h if hits is None else jnp.logical_or(hits, h)
            return jnp.where(hits, one, acc)      # single accumulator touch
        return lax.fori_loop(0, steps, body, out_ref[...])

    ovl = ovl_sm[i * nj + j]

    @pl.when(ovl != 0)
    def _():                                      # tiles share a sequence
        out_ref[...] = run(True, seq_n_ref[...])

    @pl.when(ovl == 0)
    def _():                                      # eq-only fast path
        out_ref[...] = run(False, None)


def pairwise_any_labels(flat_ids, flat_att, seq_len, *, tm=4096, tn=4096,
                        unroll=8):
    """labels_any[n] = any_m[ ids[n]==ids[m] & att[n] & att[m] & (n//L != m//L) ].

    flat_ids / flat_att: int [N] with N = BS * L; seq_len = L.
    Returns int32 [N] in {0, 1}.  Assumes token ids >= 0 (RoBERTa) so the
    negative sentinels used for invalid/padded positions never collide."""
    n = flat_ids.shape[0]
    n_pad = _round_up(max(n, 1), 1024)
    assert n_pad <= _MAX_N_PAD, (
        "m stream no longer fits SMEM; fall back to a VMEM-blocked m stream")

    tm_eff = _pick_tile(n_pad, tm, prefer_multi=True)
    tn_eff = _pick_tile(n_pad, tn, prefer_multi=False)
    assert n_pad % tm_eff == 0 and n_pad % tn_eff == 0
    assert tn_eff % unroll == 0

    idx = jnp.arange(n_pad, dtype=jnp.int32)
    ids_full = jnp.zeros((n_pad,), jnp.int32).at[:n].set(flat_ids.astype(jnp.int32))
    att_full = jnp.zeros((n_pad,), jnp.int32).at[:n].set(flat_att.astype(jnp.int32))
    # Fold attention mask + padding into the ids: invalid positions get a
    # unique negative sentinel, so they can never match any other position.
    ids_eff = jnp.where(att_full != 0, ids_full, -(idx + 1))
    seq_full = idx // jnp.int32(seq_len)

    n_i = n_pad // tm_eff
    n_j = n_pad // tn_eff

    # Host-side overlap table: can query tile i and m tile j contain a pair of
    # positions from the same sequence?  If not, the kernel drops the seq term.
    ovl = []
    for i in range(n_i):
        q_lo = (i * tm_eff) // seq_len
        q_hi = (i * tm_eff + tm_eff - 1) // seq_len
        for j in range(n_j):
            m_lo = (j * tn_eff) // seq_len
            m_hi = (j * tn_eff + tn_eff - 1) // seq_len
            ovl.append(1 if (q_lo <= m_hi and m_lo <= q_hi) else 0)
    ovl = jnp.asarray(ovl, dtype=jnp.int32)

    rows = n_pad // 128
    t_rows = tm_eff // 128
    ids_2d = ids_eff.reshape(rows, 128)           # lane-dense query view
    seq_2d = seq_full.reshape(rows, 128)

    n_block = pl.BlockSpec((t_rows, 128), lambda i, j, ids, seq, ov: (i, 0))

    out = pl.pallas_call(
        functools.partial(_labels_kernel, tn=tn_eff, unroll=unroll),
        out_shape=jax.ShapeDtypeStruct((rows, 128), jnp.int32),
        grid_spec=pltpu.PrefetchScalarGridSpec(
            num_scalar_prefetch=3,
            grid=(n_i, n_j),
            in_specs=[n_block, n_block],
            out_specs=pl.BlockSpec((t_rows, 128),
                                   lambda i, j, ids, seq, ov: (i, 0)),
        ),
        compiler_params=pltpu.CompilerParams(
            dimension_semantics=("parallel", "arbitrary")),
    )(ids_eff, seq_full, ovl, ids_2d, seq_2d)
    return out.reshape(n_pad)[:n]


def language_modeling_transform_forward(input_ids, attention_mask, masking_ratio,
                                        rng_key, *, tm=4096, tn=4096):
    """Equivalent of LanguageModelingTransform.forward for the
    bidirectional + uniform masking + enforce_masking_positives branch.

    input_ids, attention_mask: int32 [1, BS, L].
    Returns dict of int32 arrays matching the PyTorch outputs (int32 not int64)."""
    assert input_ids.shape[0] == 1
    _, bs, length = input_ids.shape
    n_total = bs * length

    flat_ids = input_ids.reshape(n_total)
    flat_att = attention_mask.reshape(n_total)

    labels_any = pairwise_any_labels(flat_ids, flat_att, length, tm=tm, tn=tn)
    labels = labels_any.reshape(1, bs, length).astype(bool)
    labels = jnp.logical_and(
        labels, jnp.logical_and(input_ids != BOS_ID, input_ids != EOS_ID))

    # effective per-position masking probability (matches original; not clamped)
    n_labels = jnp.maximum(jnp.sum(labels.astype(jnp.int32)), 1)
    eff_ratio = jnp.sum(attention_mask).astype(jnp.float32) * masking_ratio / \
        n_labels.astype(jnp.float32)

    # Random masking of eligible positions (np.random.random() -> jax.random.uniform)
    rand = jax.random.uniform(rng_key, shape=input_ids.shape, dtype=jnp.float32)
    do_mask = jnp.logical_and(labels, rand < eff_ratio)

    masked_input_ids = jnp.where(do_mask, jnp.int32(MASK_ID), input_ids)
    label_mask = do_mask.astype(jnp.int32)

    return {
        "input_ids": input_ids,
        "masked_input_ids": masked_input_ids,
        "attention_mask": attention_mask,
        "label_mask": label_mask,
        "_labels": labels.astype(jnp.int32),  # exposed for verification
    }


def _reference_labels_any(flat_ids, flat_att, seq_len):
    """Pure-JAX reference of the pairwise-match / block-diag / any reduction."""
    n_total = flat_ids.shape[0]
    eq = flat_ids[:, None] == flat_ids[None, :]
    att = (flat_att[:, None] * flat_att[None, :]) != 0
    seq = jnp.arange(n_total) // seq_len
    same = seq[:, None] == seq[None, :]           # block_diag of ones(BS,L,L)
    lab = jnp.logical_and(jnp.logical_and(eq, att), ~same)
    return jnp.any(lab, -1).astype(jnp.int32)


def _reference_labels(input_ids, attention_mask):
    _, bs, length = input_ids.shape
    lab = _reference_labels_any(input_ids.reshape(-1),
                                attention_mask.reshape(-1), length)
    lab = lab.reshape(1, bs, length).astype(bool)
    lab = jnp.logical_and(
        lab, jnp.logical_and(input_ids != BOS_ID, input_ids != EOS_ID))
    return lab.astype(jnp.int32)


if __name__ == "__main__":
    key = jax.random.PRNGKey(0)
    k_ids, k_len, k_mask = jax.random.split(key, 3)

    # N = BS*L = 2560 -> padded to 3072.  With tm=tn=1024 this is a 3x3 grid
    # that exercises padding, the multi-tile parallel query axis, the resident
    # OR-accumulator over the reduction axis, and BOTH kernel paths
    # (seq-checked tiles near the diagonal, eq-only fast path off-diagonal).
    BS, L = 16, 160
    body = jax.random.randint(k_ids, (1, BS, L), 3, 20, dtype=jnp.int32)
    input_ids = body.at[:, :, 0].set(BOS_ID)                # bos at position 0

    # Deterministic per-sequence valid lengths, eos at the last valid slot,
    # pad + zero attention after that.
    seq_lens = jax.random.randint(k_len, (BS,), L // 2, L, dtype=jnp.int32)
    pos = jnp.arange(L, dtype=jnp.int32)[None, :]
    attention_mask = (pos < seq_lens[:, None]).astype(jnp.int32)[None]   # [1,BS,L]
    input_ids = jnp.where(pos[None] == (seq_lens[:, None] - 1)[None],
                          jnp.int32(EOS_ID), input_ids)
    input_ids = jnp.where(attention_mask == 0, jnp.int32(PAD_ID), input_ids)

    # Sentinel trick requires non-negative token ids (true for RoBERTa).
    assert int(jnp.min(input_ids)) >= 0

    flat_ids = input_ids.reshape(-1)
    flat_att = attention_mask.reshape(-1)
    ref_any = _reference_labels_any(flat_ids, flat_att, L)

    # Small tiles: 3x3 grid, both seq-checked and eq-only paths.
    got_small = jax.block_until_ready(
        pairwise_any_labels(flat_ids, flat_att, L, tm=1024, tn=1024))
    assert jnp.array_equal(got_small, ref_any), "labels mismatch (tm=tn=1024)"

    # Default tile selection (what large-N runs would use).
    got_default = jax.block_until_ready(
        pairwise_any_labels(flat_ids, flat_att, L))
    assert jnp.array_equal(got_default, ref_any), "labels mismatch (default tiles)"

    out = language_modeling_transform_forward(
        input_ids, attention_mask, masking_ratio=0.15, rng_key=k_mask,
        tm=1024, tn=1024)
    out = jax.tree_util.tree_map(jax.block_until_ready, out)

    # Verify the Pallas-computed labels against the pure-JAX reference.
    ref = _reference_labels(input_ids, attention_mask)
    assert jnp.array_equal(out["_labels"], ref), "labels mismatch vs reference"
    # label_mask may only be set where labels are set; masked positions hold MASK_ID.
    assert bool(jnp.all(out["label_mask"] <= out["_labels"]))
    assert bool(jnp.all(jnp.where(out["label_mask"] == 1,
                                  out["masked_input_ids"] == MASK_ID,
                                  out["masked_input_ids"] == out["input_ids"])))
    print("KERNEL_OK")
</pallas_src>

<mosaic_0001>
module attributes {stable_mosaic.version = 11 : i64} {
  func.func @_labels_kernel(%arg0: i32, %arg1: i32, %arg2: memref<3072xi32, #tpu.memory_space<smem>>, %arg3: memref<3072xi32, #tpu.memory_space<smem>>, %arg4: memref<9xi32, #tpu.memory_space<smem>>, %arg5: memref<8x128xi32, #tpu.memory_space<vmem>>, %arg6: memref<8x128xi32, #tpu.memory_space<vmem>>, %arg7: memref<8x128xi32, #tpu.memory_space<vmem>>) attributes {dimension_semantics = [#tpu.dimension_semantics<parallel>, #tpu.dimension_semantics<arbitrary>], iteration_bounds = array<i64: 3, 3>, scalar_prefetch = 3 : i64, scratch_operands = 0 : i64, tpu.core_type = #tpu.core_type<tc>, window_params = [{transform_indices = @transform_0, window_bounds = array<i64: 8, 128>}, {transform_indices = @transform_1, window_bounds = array<i64: 8, 128>}, {transform_indices = @transform_2, window_bounds = array<i64: 8, 128>}]} {
    %c0_i32 = arith.constant 0 : i32
    %0 = arith.cmpi eq, %arg1, %c0_i32 : i32
    %1 = arith.extui %0 : i1 to i32
    %c0_i32_0 = arith.constant 0 : i32
    %2 = arith.cmpi ne, %1, %c0_i32_0 : i32
    scf.if %2 {
      %c0_i32_6 = arith.constant 0 : i32
      %16 = vector.broadcast %c0_i32_6 : i32 to vector<8x128xi32>
      %c0_7 = arith.constant 0 : index
      %c0_8 = arith.constant 0 : index
      %17 = vector.load %arg7[%c0_7, %c0_8] : memref<8x128xi32, #tpu.memory_space<vmem>>, vector<8x128xi32>
      tpu.vector_store %arg7[%c0_7, %c0_8], %16 {strides = array<i32>} : memref<8x128xi32, #tpu.memory_space<vmem>>, vector<8x128xi32>,
    } else {
    }
    %c0 = arith.constant 0 : index
    %c0_1 = arith.constant 0 : index
    %3 = vector.load %arg5[%c0, %c0_1] : memref<8x128xi32, #tpu.memory_space<vmem>>, vector<8x128xi32>
    %c1_i32 = arith.constant 1 : i32
    %4 = vector.broadcast %c1_i32 : i32 to vector<8x128xi32>
    %c1024_i32 = arith.constant 1024 : i32
    %5 = arith.muli %arg1, %c1024_i32 : i32
    %c3_i32 = arith.constant 3 : i32
    %6 = arith.muli %arg0, %c3_i32 : i32
    %7 = arith.addi %6, %arg1 : i32
    %8 = arith.index_cast %7 : i32 to index
    %9 = memref.load %arg4[%8] : memref<9xi32, #tpu.memory_space<smem>>
    %c0_i32_2 = arith.constant 0 : i32
    %10 = arith.cmpi ne, %9, %c0_i32_2 : i32
    %11 = arith.extui %10 : i1 to i32
    %c0_i32_3 = arith.constant 0 : i32
    %12 = arith.cmpi ne, %11, %c0_i32_3 : i32
    scf.if %12 {
      %c0_6 = arith.constant 0 : index
      %c0_7 = arith.constant 0 : index
      %16 = vector.load %arg6[%c0_6, %c0_7] : memref<8x128xi32, #tpu.memory_space<vmem>>, vector<8x128xi32>
      %c0_8 = arith.constant 0 : index
      %c0_9 = arith.constant 0 : index
      %17 = vector.load %arg7[%c0_8, %c0_9] : memref<8x128xi32, #tpu.memory_space<vmem>>, vector<8x128xi32>
      %c0_i32_10 = arith.constant 0 : i32
      %c128_i32 = arith.constant 128 : i32
      %18 = arith.addi %c0_i32_10, %c128_i32 : i32
      %c1_i32_11 = arith.constant 1 : i32
      %19 = scf.for %arg8 = %c0_i32_10 to %18 step %c1_i32_11 iter_args(%arg9 = %17) -> (vector<8x128xi32>)  : i32 {
        %c8_i32 = arith.constant 8 : i32
        %21 = arith.muli %arg8, %c8_i32 : i32
        %22 = arith.addi %5, %21 : i32
        %c0_i32_15 = arith.constant 0 : i32
        %23 = arith.addi %22, %c0_i32_15 : i32
        %24 = arith.index_cast %23 : i32 to index
        %25 = memref.load %arg2[%24] : memref<3072xi32, #tpu.memory_space<smem>>
        %26 = vector.broadcast %25 : i32 to vector<8x128xi32>
        %27 = arith.cmpi eq, %3, %26 : vector<8x128xi32>
        %c0_i32_16 = arith.constant 0 : i32
        %28 = arith.addi %22, %c0_i32_16 : i32
        %29 = arith.index_cast %28 : i32 to index
        %30 = memref.load %arg3[%29] : memref<3072xi32, #tpu.memory_space<smem>>
        %31 = vector.broadcast %30 : i32 to vector<8x128xi32>
        %32 = arith.cmpi ne, %16, %31 : vector<8x128xi32>
        %33 = arith.andi %27, %32 : vector<8x128xi1>
        %c1_i32_17 = arith.constant 1 : i32
        %34 = arith.addi %22, %c1_i32_17 : i32
        %35 = arith.index_cast %34 : i32 to index
        %36 = memref.load %arg2[%35] : memref<3072xi32, #tpu.memory_space<smem>>
        %37 = vector.broadcast %36 : i32 to vector<8x128xi32>
        %38 = arith.cmpi eq, %3, %37 : vector<8x128xi32>
        %c1_i32_18 = arith.constant 1 : i32
        %39 = arith.addi %22, %c1_i32_18 : i32
        %40 = arith.index_cast %39 : i32 to index
        %41 = memref.load %arg3[%40] : memref<3072xi32, #tpu.memory_space<smem>>
        %42 = vector.broadcast %41 : i32 to vector<8x128xi32>
        %43 = arith.cmpi ne, %16, %42 : vector<8x128xi32>
        %44 = arith.andi %38, %43 : vector<8x128xi1>
        %45 = arith.ori %33, %44 : vector<8x128xi1>
        %c2_i32 = arith.constant 2 : i32
        %46 = arith.addi %22, %c2_i32 : i32
        %47 = arith.index_cast %46 : i32 to index
        %48 = memref.load %arg2[%47] : memref<3072xi32, #tpu.memory_space<smem>>
        %49 = vector.broadcast %48 : i32 to vector<8x128xi32>
        %50 = arith.cmpi eq, %3, %49 : vector<8x128xi32>
        %c2_i32_19 = arith.constant 2 : i32
        %51 = arith.addi %22, %c2_i32_19 : i32
        %52 = arith.index_cast %51 : i32 to index
        %53 = memref.load %arg3[%52] : memref<3072xi32, #tpu.memory_space<smem>>
        %54 = vector.broadcast %53 : i32 to vector<8x128xi32>
        %55 = arith.cmpi ne, %16, %54 : vector<8x128xi32>
        %56 = arith.andi %50, %55 : vector<8x128xi1>
        %57 = arith.ori %45, %56 : vector<8x128xi1>
        %c3_i32_20 = arith.constant 3 : i32
        %58 = arith.addi %22, %c3_i32_20 : i32
        %59 = arith.index_cast %58 : i32 to index
        %60 = memref.load %arg2[%59] : memref<3072xi32, #tpu.memory_space<smem>>
        %61 = vector.broadcast %60 : i32 to vector<8x128xi32>
        %62 = arith.cmpi eq, %3, %61 : vector<8x128xi32>
        %c3_i32_21 = arith.constant 3 : i32
        %63 = arith.addi %22, %c3_i32_21 : i32
        %64 = arith.index_cast %63 : i32 to index
        %65 = memref.load %arg3[%64] : memref<3072xi32, #tpu.memory_space<smem>>
        %66 = vector.broadcast %65 : i32 to vector<8x128xi32>
        %67 = arith.cmpi ne, %16, %66 : vector<8x128xi32>
        %68 = arith.andi %62, %67 : vector<8x128xi1>
        %69 = arith.ori %57, %68 : vector<8x128xi1>
        %c4_i32 = arith.constant 4 : i32
        %70 = arith.addi %22, %c4_i32 : i32
        %71 = arith.index_cast %70 : i32 to index
        %72 = memref.load %arg2[%71] : memref<3072xi32, #tpu.memory_space<smem>>
        %73 = vector.broadcast %72 : i32 to vector<8x128xi32>
        %74 = arith.cmpi eq, %3, %73 : vector<8x128xi32>
        %c4_i32_22 = arith.constant 4 : i32
        %75 = arith.addi %22, %c4_i32_22 : i32
        %76 = arith.index_cast %75 : i32 to index
        %77 = memref.load %arg3[%76] : memref<3072xi32, #tpu.memory_space<smem>>
        %78 = vector.broadcast %77 : i32 to vector<8x128xi32>
        %79 = arith.cmpi ne, %16, %78 : vector<8x128xi32>
        %80 = arith.andi %74, %79 : vector<8x128xi1>
        %81 = arith.ori %69, %80 : vector<8x128xi1>
        %c5_i32 = arith.constant 5 : i32
        %82 = arith.addi %22, %c5_i32 : i32
        %83 = arith.index_cast %82 : i32 to index
        %84 = memref.load %arg2[%83] : memref<3072xi32, #tpu.memory_space<smem>>
        %85 = vector.broadcast %84 : i32 to vector<8x128xi32>
        %86 = arith.cmpi eq, %3, %85 : vector<8x128xi32>
        %c5_i32_23 = arith.constant 5 : i32
        %87 = arith.addi %22, %c5_i32_23 : i32
        %88 = arith.index_cast %87 : i32 to index
        %89 = memref.load %arg3[%88] : memref<3072xi32, #tpu.memory_space<smem>>
        %90 = vector.broadcast %89 : i32 to vector<8x128xi32>
        %91 = arith.cmpi ne, %16, %90 : vector<8x128xi32>
        %92 = arith.andi %86, %91 : vector<8x128xi1>
        %93 = arith.ori %81, %92 : vector<8x128xi1>
        %c6_i32 = arith.constant 6 : i32
        %94 = arith.addi %22, %c6_i32 : i32
        %95 = arith.index_cast %94 : i32 to index
        %96 = memref.load %arg2[%95] : memref<3072xi32, #tpu.memory_space<smem>>
        %97 = vector.broadcast %96 : i32 to vector<8x128xi32>
        %98 = arith.cmpi eq, %3, %97 : vector<8x128xi32>
        %c6_i32_24 = arith.constant 6 : i32
        %99 = arith.addi %22, %c6_i32_24 : i32
        %100 = arith.index_cast %99 : i32 to index
        %101 = memref.load %arg3[%100] : memref<3072xi32, #tpu.memory_space<smem>>
        %102 = vector.broadcast %101 : i32 to vector<8x128xi32>
        %103 = arith.cmpi ne, %16, %102 : vector<8x128xi32>
        %104 = arith.andi %98, %103 : vector<8x128xi1>
        %105 = arith.ori %93, %104 : vector<8x128xi1>
        %c7_i32 = arith.constant 7 : i32
        %106 = arith.addi %22, %c7_i32 : i32
        %107 = arith.index_cast %106 : i32 to index
        %108 = memref.load %arg2[%107] : memref<3072xi32, #tpu.memory_space<smem>>
        %109 = vector.broadcast %108 : i32 to vector<8x128xi32>
        %110 = arith.cmpi eq, %3, %109 : vector<8x128xi32>
        %c7_i32_25 = arith.constant 7 : i32
        %111 = arith.addi %22, %c7_i32_25 : i32
        %112 = arith.index_cast %111 : i32 to index
        %113 = memref.load %arg3[%112] : memref<3072xi32, #tpu.memory_space<smem>>
        %114 = vector.broadcast %113 : i32 to vector<8x128xi32>
        %115 = arith.cmpi ne, %16, %114 : vector<8x128xi32>
        %116 = arith.andi %110, %115 : vector<8x128xi1>
        %117 = arith.ori %105, %116 : vector<8x128xi1>
        %118 = arith.select %117, %4, %arg9 : vector<8x128xi1>, vector<8x128xi32>
        scf.yield %118 : vector<8x128xi32>
      }
      %c128_i32_12 = arith.constant 128 : i32
      %c0_13 = arith.constant 0 : index
      %c0_14 = arith.constant 0 : index
      %20 = vector.load %arg7[%c0_13, %c0_14] : memref<8x128xi32, #tpu.memory_space<vmem>>, vector<8x128xi32>
      tpu.vector_store %arg7[%c0_13, %c0_14], %19 {strides = array<i32>} : memref<8x128xi32, #tpu.memory_space<vmem>>, vector<8x128xi32>,
    } else {
    }
    %c0_i32_4 = arith.constant 0 : i32
    %13 = arith.cmpi eq, %9, %c0_i32_4 : i32
    %14 = arith.extui %13 : i1 to i32
    %c0_i32_5 = arith.constant 0 : i32
    %15 = arith.cmpi ne, %14, %c0_i32_5 : i32
    scf.if %15 {
      %c0_6 = arith.constant 0 : index
      %c0_7 = arith.constant 0 : index
      %16 = vector.load %arg7[%c0_6, %c0_7] : memref<8x128xi32, #tpu.memory_space<vmem>>, vector<8x128xi32>
      %c0_i32_8 = arith.constant 0 : i32
      %c128_i32 = arith.constant 128 : i32
      %17 = arith.addi %c0_i32_8, %c128_i32 : i32
      %c1_i32_9 = arith.constant 1 : i32
      %18 = scf.for %arg8 = %c0_i32_8 to %17 step %c1_i32_9 iter_args(%arg9 = %16) -> (vector<8x128xi32>)  : i32 {
        %c8_i32 = arith.constant 8 : i32
        %20 = arith.muli %arg8, %c8_i32 : i32
        %21 = arith.addi %5, %20 : i32
        %c0_i32_13 = arith.constant 0 : i32
        %22 = arith.addi %21, %c0_i32_13 : i32
        %23 = arith.index_cast %22 : i32 to index
        %24 = memref.load %arg2[%23] : memref<3072xi32, #tpu.memory_space<smem>>
        %25 = vector.broadcast %24 : i32 to vector<8x128xi32>
        %26 = arith.cmpi eq, %3, %25 : vector<8x128xi32>
        %c1_i32_14 = arith.constant 1 : i32
        %27 = arith.addi %21, %c1_i32_14 : i32
        %28 = arith.index_cast %27 : i32 to index
        %29 = memref.load %arg2[%28] : memref<3072xi32, #tpu.memory_space<smem>>
        %30 = vector.broadcast %29 : i32 to vector<8x128xi32>
        %31 = arith.cmpi eq, %3, %30 : vector<8x128xi32>
        %32 = arith.ori %26, %31 : vector<8x128xi1>
        %c2_i32 = arith.constant 2 : i32
        %33 = arith.addi %21, %c2_i32 : i32
        %34 = arith.index_cast %33 : i32 to index
        %35 = memref.load %arg2[%34] : memref<3072xi32, #tpu.memory_space<smem>>
        %36 = vector.broadcast %35 : i32 to vector<8x128xi32>
        %37 = arith.cmpi eq, %3, %36 : vector<8x128xi32>
        %38 = arith.ori %32, %37 : vector<8x128xi1>
        %c3_i32_15 = arith.constant 3 : i32
        %39 = arith.addi %21, %c3_i32_15 : i32
        %40 = arith.index_cast %39 : i32 to index
        %41 = memref.load %arg2[%40] : memref<3072xi32, #tpu.memory_space<smem>>
        %42 = vector.broadcast %41 : i32 to vector<8x128xi32>
        %43 = arith.cmpi eq, %3, %42 : vector<8x128xi32>
        %44 = arith.ori %38, %43 : vector<8x128xi1>
        %c4_i32 = arith.constant 4 : i32
        %45 = arith.addi %21, %c4_i32 : i32
        %46 = arith.index_cast %45 : i32 to index
        %47 = memref.load %arg2[%46] : memref<3072xi32, #tpu.memory_space<smem>>
        %48 = vector.broadcast %47 : i32 to vector<8x128xi32>
        %49 = arith.cmpi eq, %3, %48 : vector<8x128xi32>
        %50 = arith.ori %44, %49 : vector<8x128xi1>
        %c5_i32 = arith.constant 5 : i32
        %51 = arith.addi %21, %c5_i32 : i32
        %52 = arith.index_cast %51 : i32 to index
        %53 = memref.load %arg2[%52] : memref<3072xi32, #tpu.memory_space<smem>>
        %54 = vector.broadcast %53 : i32 to vector<8x128xi32>
        %55 = arith.cmpi eq, %3, %54 : vector<8x128xi32>
        %56 = arith.ori %50, %55 : vector<8x128xi1>
        %c6_i32 = arith.constant 6 : i32
        %57 = arith.addi %21, %c6_i32 : i32
        %58 = arith.index_cast %57 : i32 to index
        %59 = memref.load %arg2[%58] : memref<3072xi32, #tpu.memory_space<smem>>
        %60 = vector.broadcast %59 : i32 to vector<8x128xi32>
        %61 = arith.cmpi eq, %3, %60 : vector<8x128xi32>
        %62 = arith.ori %56, %61 : vector<8x128xi1>
        %c7_i32 = arith.constant 7 : i32
        %63 = arith.addi %21, %c7_i32 : i32
        %64 = arith.index_cast %63 : i32 to index
        %65 = memref.load %arg2[%64] : memref<3072xi32, #tpu.memory_space<smem>>
        %66 = vector.broadcast %65 : i32 to vector<8x128xi32>
        %67 = arith.cmpi eq, %3, %66 : vector<8x128xi32>
        %68 = arith.ori %62, %67 : vector<8x128xi1>
        %69 = arith.select %68, %4, %arg9 : vector<8x128xi1>, vector<8x128xi32>
        scf.yield %69 : vector<8x128xi32>
      }
      %c128_i32_10 = arith.constant 128 : i32
      %c0_11 = arith.constant 0 : index
      %c0_12 = arith.constant 0 : index
      %19 = vector.load %arg7[%c0_11, %c0_12] : memref<8x128xi32, #tpu.memory_space<vmem>>, vector<8x128xi32>
      tpu.vector_store %arg7[%c0_11, %c0_12], %18 {strides = array<i32>} : memref<8x128xi32, #tpu.memory_space<vmem>>, vector<8x128xi32>,
    } else {
    }
    return
  }
  func.func @transform_0(%arg0: i32, %arg1: i32, %arg2: memref<3072xi32, #tpu.memory_space<smem>>, %arg3: memref<3072xi32, #tpu.memory_space<smem>>, %arg4: memref<9xi32, #tpu.memory_space<smem>>) -> (i32, i32) {
    %c0_i32 = arith.constant 0 : i32
    %c0_i32_0 = arith.constant 0 : i32
    return %arg0, %c0_i32 : i32, i32
  }
  func.func @transform_1(%arg0: i32, %arg1: i32, %arg2: memref<3072xi32, #tpu.memory_space<smem>>, %arg3: memref<3072xi32, #tpu.memory_space<smem>>, %arg4: memref<9xi32, #tpu.memory_space<smem>>) -> (i32, i32) {
    %c0_i32 = arith.constant 0 : i32
    %c0_i32_0 = arith.constant 0 : i32
    return %arg0, %c0_i32 : i32, i32
  }
  func.func @transform_2(%arg0: i32, %arg1: i32, %arg2: memref<3072xi32, #tpu.memory_space<smem>>, %arg3: memref<3072xi32, #tpu.memory_space<smem>>, %arg4: memref<9xi32, #tpu.memory_space<smem>>) -> (i32, i32) {
    %c0_i32 = arith.constant 0 : i32
    %c0_i32_0 = arith.constant 0 : i32
    return %arg0, %c0_i32 : i32, i32
  }
}

</mosaic_0001>

<llo_original>
// kernel: tpu_custom_call.1
$region0: #{tpu_custom_call.1}
  #allocation0 [shape = 'u32[]', space=smem, size = 0x4, offset = 0x4, fixed_abs, tag = 'smem constant byte address 0x4 - core index']
  #allocation1 [shape = 'u32[144,128]{1,0:T(1,128)}', space=vmem, size = 0x12000, scoped, tag = 'internal scratch']
  #allocation2 [shape = 's32[1]{0}', space=sflag, size = 0x4, scoped, tag = 'scoped memory for tpu_custom_call.1']
  #allocation3 [shape = 'u8[12288]{0}', space=smem, size = 0x3000, scoped, tag = 'prefetched SMEM operand 0']
  #allocation4 [shape = 'u8[12288]{0}', space=smem, size = 0x3000, scoped, tag = 'prefetched SMEM operand 1']
  #allocation5 [shape = 'u8[512]{0}', space=smem, size = 0x200, scoped, tag = 'prefetched SMEM operand 2']
  %s0 = inlined_call_operand.hbm [shape: s32[3072], index: 0, kind: input, shape index: {}]
  %s1 = inlined_call_operand.hbm [shape: s32[3072], index: 1, kind: input, shape index: {}]
  %s2 = inlined_call_operand.vmem [shape: s32[9], index: 2, kind: input, shape index: {}]
  %s3 = inlined_call_operand.hbm [shape: s32[24,128], index: 3, kind: input, shape index: {}]
  %s4 = inlined_call_operand.hbm [shape: s32[24,128], index: 4, kind: input, shape index: {}]
  %s5 = inlined_call_operand.hbm [shape: s32[24,128], index: 5, kind: output, shape index: {}]
  %s6 = sld [smem:[#allocation0]]
  $region75: #{tpu_custom_call.1} parent=0
    _
  %s8 = ssub.s32 1, %s6
  %s9 = scalar_select 0, %s8, %s6
  %11 = dma.hbm_to_smem %s0, 384, [#allocation3], [#allocation2]
  %13 = dma.hbm_to_smem %s1, 384, [#allocation4], [#allocation2]
  %s14 = sshll.u32 %s2, 4
  %s15 = int_to_ptr.vmem [resolvable:$true] %s14
  %17 = dma.vmem_to_smem %s15, 16, [#allocation5], [#allocation2]
  %18 = dma.done [#allocation2], 784
  %19 = sfence
  $region1: #{tpu_custom_call.1} parent=0
    #allocation6 [shape = 'u8[8192]{0}', space=vmem, size = 0x2000, scoped, tag = 'input window, operand 3']
    #allocation7 [shape = 's32[2]{0}', space=sflag, size = 0x8, scoped, tag = 'scoped memory for tpu_custom_call.1']
    #allocation8 [shape = 's32[2]{0}', space=sflag, size = 0x8, scoped, tag = 'scoped memory for tpu_custom_call.1']
    #allocation9 [shape = 'u8[8192]{0}', space=vmem, size = 0x2000, scoped, tag = 'input window, operand 4']
    #allocation10 [shape = 's32[2]{0}', space=sflag, size = 0x8, scoped, tag = 'scoped memory for tpu_custom_call.1']
    #allocation11 [shape = 'u8[8192]{0}', space=vmem, size = 0x2000, scoped, tag = 'output window, operand 0']
    %20 = vsyncpa [#allocation7], 0
    %s21 = scalar_lea.sflag [#allocation7], 1
    %22 = vsyncpa %s21, 0
    %23 = vsyncpa [#allocation10], 0
    %s24 = scalar_lea.sflag [#allocation10], 1
    %25 = vsyncpa %s24, 0
    %26 = vsyncpa [#allocation8], 0
    %s27 = scalar_lea.sflag [#allocation8], 1
    %28 = vsyncpa %s27, 0
    loop: start=0, step=1, limit=11
    $region2: #{tpu_custom_call.1} parent=1 // loop_pre_header
      _
    $region3: #{tpu_custom_call.1} parent=1 // loop_header
      %s30 = sphi 0, %s34
      %p31 = scmp.ge.s32.totalorder %s30, 11
      %s37 = sphi 0, %s49
      %s38 = sphi 0, %s45
      %s39 = sphi 0, %s37
      %s40 = sphi 0, %s38
      %s41 = sphi 0, %s39
      %s42 = sphi 0, %s40
      %s52 = sphi 0, %s54
      %s55 = sphi 0, %s52
      %s56 = sphi 0, %s55
      %s72 = sphi 0, %s56
      %s78 = sphi 0, %s80
      %s81 = sphi 0, %s78
      %s82 = sphi 0, %s81
      %s98 = sphi 0, %s82
      %s104 = sphi 0, %s106
      %s107 = sphi 0, %s104
      %s108 = sphi 0, %s107
      %s124 = sphi 0, %s108
    $region4: #{tpu_custom_call.1} parent=1 // loop_header_branch
      %33 = sbr.rel (%p31) target = $region8
    $region5: #{tpu_custom_call.1} parent=1 // loop_body
      %s35 = ssub.s32 %s30, 1
      %s36 = ssub.s32 %s30, 2
      %s43 = sadd.s32 1, %s38
      %p44 = scmp.ge.s32.totalorder %s43, 3
      %s45 = scalar_select %p44, 0, %s43
      %s46 = sadd.s32 1, %s37
      %s47 = scalar_select %p44, %s46, %s37
      %p48 = scmp.ge.s32.totalorder %s47, 3
      %s49 = scalar_select %p48, 0, %s47
      %s50 = ssub.s32 %s37, %s49
      %p51 = scmp.eq.s32.totalorder %s50, 0
      %s53 = sadd.s32 %s52, 1
      %s54 = scalar_select %p51, %s52, %s53
      %p57 = pneg %p51
      %p58 = scmp.eq.s32.totalorder %s30, 8
      %p59 = por %p57, %p58
      %p60 = scmp.ne.s32.totalorder %s52, %s55
      %p61 = scmp.eq.s32.totalorder %s30, 0
      %p62 = por %p60, %p61
      %p63 = scmp.ne.s32.totalorder %s52, %s55
      %p64 = scmp.eq.s32.totalorder %s35, 8
      %p65 = por %p63, %p64
      %p66 = scmp.ne.s32.totalorder %s55, %s56
      %p67 = scmp.eq.s32.totalorder %s35, 0
      %p68 = por %p66, %p67
      %p69 = scmp.ne.s32.totalorder %s55, %s56
      %p70 = scmp.eq.s32.totalorder %s36, 8
      %p71 = por %p69, %p70
      %p73 = scmp.ne.s32.totalorder %s56, %s72
      %p74 = scmp.eq.s32.totalorder %s36, 0
      %p75 = por %p73, %p74
      %s76 = ssub.s32 %s37, %s49
      %p77 = scmp.eq.s32.totalorder %s76, 0
      %s79 = sadd.s32 %s78, 1
      %s80 = scalar_select %p77, %s78, %s79
      %p83 = pneg %p77
      %p84 = scmp.eq.s32.totalorder %s30, 8
      %p85 = por %p83, %p84
      %p86 = scmp.ne.s32.totalorder %s78, %s81
      %p87 = scmp.eq.s32.totalorder %s30, 0
      %p88 = por %p86, %p87
      %p89 = scmp.ne.s32.totalorder %s78, %s81
      %p90 = scmp.eq.s32.totalorder %s35, 8
      %p91 = por %p89, %p90
      %p92 = scmp.ne.s32.totalorder %s81, %s82
      %p93 = scmp.eq.s32.totalorder %s35, 0
      %p94 = por %p92, %p93
      %p95 = scmp.ne.s32.totalorder %s81, %s82
      %p96 = scmp.eq.s32.totalorder %s36, 8
      %p97 = por %p95, %p96
      %p99 = scmp.ne.s32.totalorder %s82, %s98
      %p100 = scmp.eq.s32.totalorder %s36, 0
      %p101 = por %p99, %p100
      %s102 = ssub.s32 %s37, %s49
      %p103 = scmp.eq.s32.totalorder %s102, 0
      %s105 = sadd.s32 %s104, 1
      %s106 = scalar_select %p103, %s104, %s105
      %p109 = pneg %p103
      %p110 = scmp.eq.s32.totalorder %s30, 8
      %p111 = por %p109, %p110
      %p112 = scmp.ne.s32.totalorder %s104, %s107
      %p113 = scmp.eq.s32.totalorder %s30, 0
      %p114 = por %p112, %p113
      %p115 = scmp.ne.s32.totalorder %s104, %s107
      %p116 = scmp.eq.s32.totalorder %s35, 8
      %p117 = por %p115, %p116
      %p118 = scmp.ne.s32.totalorder %s107, %s108
      %p119 = scmp.eq.s32.totalorder %s35, 0
      %p120 = por %p118, %p119
      %p121 = scmp.ne.s32.totalorder %s107, %s108
      %p122 = scmp.eq.s32.totalorder %s36, 8
      %p123 = por %p121, %p122
      %p125 = scmp.ne.s32.totalorder %s108, %s124
      %p126 = scmp.eq.s32.totalorder %s36, 0
      %p127 = por %p125, %p126
      %p128 = scmp.le.s32.totalorder 1, %s30
      %p129 = scmp.lt.s32.totalorder %s30, 10
      %p130 = pnand %p128, %p129
      %p131 = pneg %p130
      // Predicated region
      $region9: #{tpu_custom_call.1} parent=5 // pred_check
        _
      $region10: #{tpu_custom_call.1} parent=5 // pred_check_branch
        %133 = sbr.rel (%p130) target = $region12
      $region11: #{tpu_custom_call.1} parent=5 // pred_region
        %s134 = ssub.s32 %s30, 1
      $region12: #{tpu_custom_call.1} parent=5 // pred_fallthru
        _
      %p135 = scmp.lt.s32.totalorder %s30, 9
      // Predicated region
      $region13: #{tpu_custom_call.1} parent=5 // pred_check
        %p136 = pneg %p135
      $region14: #{tpu_custom_call.1} parent=5 // pred_check_branch
        %138 = sbr.rel (%p136) target = $region16
      $region15: #{tpu_custom_call.1} parent=5 // pred_region
        // Predicated region
        $region17: #{tpu_custom_call.1} parent=15 // pred_check
          %p139 = pneg %p62
        $region18: #{tpu_custom_call.1} parent=15 // pred_check_branch
          %141 = sbr.rel (%p139) target = $region20
        $region19: #{tpu_custom_call.1} parent=15 // pred_region
          %s142 = sand.u32 %s52, 1
          %s143 = scalar_lea.sflag [#allocation7], %s142
          %s144 = sand.u32 %s52, 1
          %s145 = smul.addr %s144, 8
          %s146 = scalar_lea.vmem [#allocation6], %s145
          %s148 = ssub.s32 128, 128
          %149 = vsyncadd %s143, %s148
          %s150 = smul.addr %s37, 128
          %s151 = scalar_lea.hbm %s3, %s150
          %s153 = sshll.u32 %s146, 4
          %s154 = int_to_ptr.vmem [resolvable:$true] %s153
          %156 = dma.hbm_to_vmem [thread:$0]  %s151, 128, %s154, %s143
        $region20: #{tpu_custom_call.1} parent=15 // pred_fallthru
          _
        // Predicated region
        $region21: #{tpu_custom_call.1} parent=15 // pred_check
          %p157 = pneg %p88
        $region22: #{tpu_custom_call.1} parent=15 // pred_check_branch
          %159 = sbr.rel (%p157) target = $region24
        $region23: #{tpu_custom_call.1} parent=15 // pred_region
          %s160 = sand.u32 %s78, 1
          %s161 = scalar_lea.sflag [#allocation10], %s160
          %s162 = sand.u32 %s78, 1
          %s163 = smul.addr %s162, 8
          %s164 = scalar_lea.vmem [#allocation9], %s163
          %s166 = ssub.s32 128, 128
          %167 = vsyncadd %s161, %s166
          %s168 = smul.addr %s37, 128
          %s169 = scalar_lea.hbm %s4, %s168
          %s171 = sshll.u32 %s164, 4
          %s172 = int_to_ptr.vmem [resolvable:$true] %s171
          %174 = dma.hbm_to_vmem [thread:$0]  %s169, 128, %s172, %s161
        $region24: #{tpu_custom_call.1} parent=15 // pred_fallthru
          _
      $region16: #{tpu_custom_call.1} parent=5 // pred_fallthru
        _
      %p175 = scmp.le.s32.totalorder 1, %s30
      %p176 = scmp.lt.s32.totalorder %s30, 10
      %p177 = pnand %p175, %p176
      %p178 = pneg %p177
      // Predicated region
      $region25: #{tpu_custom_call.1} parent=5 // pred_check
        _
      $region26: #{tpu_custom_call.1} parent=5 // pred_check_branch
        %180 = sbr.rel (%p177) target = $region28
      $region27: #{tpu_custom_call.1} parent=5 // pred_region
        %s181 = ssub.s32 %s30, 1
        %s182 = sand.u32 %s55, 1
        %s183 = scalar_lea.sflag [#allocation7], %s182
        %s184 = sand.u32 %s55, 1
        %s185 = smul.addr %s184, 8
        %s186 = scalar_lea.vmem [#allocation6], %s185
        // Predicated region
        $region29: #{tpu_custom_call.1} parent=27 // pred_check
          %p187 = pneg %p68
        $region30: #{tpu_custom_call.1} parent=27 // pred_check_branch
          %189 = sbr.rel (%p187) target = $region32
        $region31: #{tpu_custom_call.1} parent=27 // pred_region
          %190 = dma.done %s183, 128
        $region32: #{tpu_custom_call.1} parent=27 // pred_fallthru
          _
        %s191 = sand.u32 %s81, 1
        %s192 = scalar_lea.sflag [#allocation10], %s191
        %s193 = sand.u32 %s81, 1
        %s194 = smul.addr %s193, 8
        %s195 = scalar_lea.vmem [#allocation9], %s194
        // Predicated region
        $region33: #{tpu_custom_call.1} parent=27 // pred_check
          %p196 = pneg %p94
        $region34: #{tpu_custom_call.1} parent=27 // pred_check_branch
          %198 = sbr.rel (%p196) target = $region36
        $region35: #{tpu_custom_call.1} parent=27 // pred_region
          %199 = dma.done %s192, 128
        $region36: #{tpu_custom_call.1} parent=27 // pred_fallthru
          _
        %s200 = sand.u32 %s55, 1
        %s201 = scalar_lea.sflag [#allocation7], %s200
        %s202 = sand.u32 %s55, 1
        %s203 = smul.addr %s202, 8
        %s204 = scalar_lea.vmem [#allocation6], %s203
        %p205 = pneg %p68
        %p206 = pneg %p65
        %s207 = sand.u32 %s81, 1
        %s208 = scalar_lea.sflag [#allocation10], %s207
        %s209 = sand.u32 %s81, 1
        %s210 = smul.addr %s209, 8
        %s211 = scalar_lea.vmem [#allocation9], %s210
        %p212 = pneg %p94
        %p213 = pneg %p91
        %p214 = pneg %p120
        %p215 = pneg %p117
        %s216 = sand.u32 %s107, 1
        %s217 = scalar_lea.sflag [#allocation8], %s216
        %s218 = sand.u32 %s107, 1
        %s219 = smul.addr %s218, 8
        %s220 = scalar_lea.vmem [#allocation11], %s219
        %p221 = scmp.eq.s32.totalorder %s40, 0
        // Predicated region
        $region37: #{tpu_custom_call.1} parent=27 // pred_check
          %p222 = pneg %p221
        $region38: #{tpu_custom_call.1} parent=27 // pred_check_branch
          %224 = sbr.rel (%p222) target = $region40
        $region39: #{tpu_custom_call.1} parent=27 // pred_region
          %225 = vst [vmem:[%s220] sm:$0xff] 0
        $region40: #{tpu_custom_call.1} parent=27 // pred_fallthru
          _
        %v226 = vld [vmem:[%s186] sm:$0xff]
        %s227 = smul.u32 %s40, 1024
        %s228 = smul.u32 %s39, 3
        %s229 = sadd.s32 %s228, %s40
        %s230 = sld [smem:[#allocation5 + %s229]]
        %p231 = scmp.ne.s32.totalorder %s230, 0
        // Predicated region
        $region41: #{tpu_custom_call.1} parent=27 // pred_check
          %p232 = pneg %p231
        $region42: #{tpu_custom_call.1} parent=27 // pred_check_branch
          %234 = sbr.rel (%p232) target = $region44
        $region43: #{tpu_custom_call.1} parent=27 // pred_region
          %v235 = vld [vmem:[%s195] sm:$0xff]
          %v236 = vld [vmem:[%s220] sm:$0xff]
          loop: start=0, step=1, limit=128
          $region45: #{tpu_custom_call.1} parent=43 // loop_pre_header
            _
          $region46: #{tpu_custom_call.1} parent=43 // loop_header
            %s238 = sphi 0, %s242
            %p239 = scmp.ge.s32.totalorder %s238, 128
            %v243 = vphi %v236, %v316
          $region47: #{tpu_custom_call.1} parent=43 // loop_header_branch
            %241 = sbr.rel (%p239) target = $region51
          $region48: #{tpu_custom_call.1} parent=43 // loop_body
            %s244 = smul.u32 %s238, 8
            %s245 = sadd.s32 %s227, %s244
            %s246 = sld [smem:[#allocation3 + %s245]]
            %v247 = vstv %s246
            %vm248 = vcmp.eq.s32.totalorder %v226, %v247
            %s249 = sld [smem:[#allocation4 + %s245]]
            %v250 = vstv %s249
            %vm251 = vcmp.ne.s32.totalorder %v235, %v250
            %vm252 = vmand %vm248, %vm251
            %s253 = sadd.s32 %s245, 1
            %s254 = sld [smem:[#allocation3 + %s253]]
            %v255 = vstv %s254
            %vm256 = vcmp.eq.s32.totalorder %v226, %v255
            %s257 = sld [smem:[#allocation4 + %s253]]
            %v258 = vstv %s257
            %vm259 = vcmp.ne.s32.totalorder %v235, %v258
            %vm260 = vmand %vm256, %vm259
            %vm261 = vmor %vm252, %vm260
            %s262 = sadd.s32 %s245, 2
            %s263 = sld [smem:[#allocation3 + %s262]]
            %v264 = vstv %s263
            %vm265 = vcmp.eq.s32.totalorder %v226, %v264
            %s266 = sld [smem:[#allocation4 + %s262]]
            %v267 = vstv %s266
            %vm268 = vcmp.ne.s32.totalorder %v235, %v267
            %vm269 = vmand %vm265, %vm268
            %vm270 = vmor %vm261, %vm269
            %s271 = sadd.s32 %s245, 3
            %s272 = sld [smem:[#allocation3 + %s271]]
            %v273 = vstv %s272
            %vm274 = vcmp.eq.s32.totalorder %v226, %v273
            %s275 = sld [smem:[#allocation4 + %s271]]
            %v276 = vstv %s275
            %vm277 = vcmp.ne.s32.totalorder %v235, %v276
            %vm278 = vmand %vm274, %vm277
            %vm279 = vmor %vm270, %vm278
            %s280 = sadd.s32 %s245, 4
            %s281 = sld [smem:[#allocation3 + %s280]]
            %v282 = vstv %s281
            %vm283 = vcmp.eq.s32.totalorder %v226, %v282
            %s284 = sld [smem:[#allocation4 + %s280]]
            %v285 = vstv %s284
            %vm286 = vcmp.ne.s32.totalorder %v235, %v285
            %vm287 = vmand %vm283, %vm286
            %vm288 = vmor %vm279, %vm287
            %s289 = sadd.s32 %s245, 5
            %s290 = sld [smem:[#allocation3 + %s289]]
            %v291 = vstv %s290
            %vm292 = vcmp.eq.s32.totalorder %v226, %v291
            %s293 = sld [smem:[#allocation4 + %s289]]
            %v294 = vstv %s293
            %vm295 = vcmp.ne.s32.totalorder %v235, %v294
            %vm296 = vmand %vm292, %vm295
            %vm297 = vmor %vm288, %vm296
            %s298 = sadd.s32 %s245, 6
            %s299 = sld [smem:[#allocation3 + %s298]]
            %v300 = vstv %s299
            %vm301 = vcmp.eq.s32.totalorder %v226, %v300
            %s302 = sld [smem:[#allocation4 + %s298]]
            %v303 = vstv %s302
            %vm304 = vcmp.ne.s32.totalorder %v235, %v303
            %vm305 = vmand %vm301, %vm304
            %vm306 = vmor %vm297, %vm305
            %s307 = sadd.s32 %s245, 7
            %s308 = sld [smem:[#allocation3 + %s307]]
            %v309 = vstv %s308
            %vm310 = vcmp.eq.s32.totalorder %v226, %v309
            %s311 = sld [smem:[#allocation4 + %s307]]
            %v312 = vstv %s311
            %vm313 = vcmp.ne.s32.totalorder %v235, %v312
            %vm314 = vmand %vm310, %vm313
            %vm315 = vmor %vm306, %vm314
            %v316 = vsel %vm315, 1, %v243
          $region49: #{tpu_custom_call.1} parent=43 // loop_footer
            %s242 = sadd.s32 1, %s238
          $region50: #{tpu_custom_call.1} parent=43 // loop_footer_branch
            %237 = sbr.rel target = $region46
          $region51: #{tpu_custom_call.1} parent=43 // loop_exit
            _
          %317 = vst [vmem:[%s220] sm:$0xff] %v243
        $region44: #{tpu_custom_call.1} parent=27 // pred_fallthru
          _
        %p318 = scmp.eq.s32.totalorder %s230, 0
        // Predicated region
        $region52: #{tpu_custom_call.1} parent=27 // pred_check
          %p319 = pneg %p318
        $region53: #{tpu_custom_call.1} parent=27 // pred_check_branch
          %321 = sbr.rel (%p319) target = $region55
        $region54: #{tpu_custom_call.1} parent=27 // pred_region
          %v322 = vld [vmem:[%s220] sm:$0xff]
          loop: start=0, step=1, limit=128
          $region56: #{tpu_custom_call.1} parent=54 // loop_pre_header
            _
          $region57: #{tpu_custom_call.1} parent=54 // loop_header
            %s324 = sphi 0, %s328
            %p325 = scmp.ge.s32.totalorder %s324, 128
            %v329 = vphi %v322, %v370
          $region58: #{tpu_custom_call.1} parent=54 // loop_header_branch
            %327 = sbr.rel (%p325) target = $region62
          $region59: #{tpu_custom_call.1} parent=54 // loop_body
            %s330 = smul.u32 %s324, 8
            %s331 = sadd.s32 %s227, %s330
            %s332 = sld [smem:[#allocation3 + %s331]]
            %v333 = vstv %s332
            %vm334 = vcmp.eq.s32.totalorder %v226, %v333
            %s335 = sadd.s32 %s331, 1
            %s336 = sld [smem:[#allocation3 + %s335]]
            %v337 = vstv %s336
            %vm338 = vcmp.eq.s32.totalorder %v226, %v337
            %vm339 = vmor %vm334, %vm338
            %s340 = sadd.s32 %s331, 2
            %s341 = sld [smem:[#allocation3 + %s340]]
            %v342 = vstv %s341
            %vm343 = vcmp.eq.s32.totalorder %v226, %v342
            %vm344 = vmor %vm339, %vm343
            %s345 = sadd.s32 %s331, 3
            %s346 = sld [smem:[#allocation3 + %s345]]
            %v347 = vstv %s346
            %vm348 = vcmp.eq.s32.totalorder %v226, %v347
            %vm349 = vmor %vm344, %vm348
            %s350 = sadd.s32 %s331, 4
            %s351 = sld [smem:[#allocation3 + %s350]]
            %v352 = vstv %s351
            %vm353 = vcmp.eq.s32.totalorder %v226, %v352
            %vm354 = vmor %vm349, %vm353
            %s355 = sadd.s32 %s331, 5
            %s356 = sld [smem:[#allocation3 + %s355]]
            %v357 = vstv %s356
            %vm358 = vcmp.eq.s32.totalorder %v226, %v357
            %vm359 = vmor %vm354, %vm358
            %s360 = sadd.s32 %s331, 6
            %s361 = sld [smem:[#allocation3 + %s360]]
            %v362 = vstv %s361
            %vm363 = vcmp.eq.s32.totalorder %v226, %v362
            %vm364 = vmor %vm359, %vm363
            %s365 = sadd.s32 %s331, 7
            %s366 = sld [smem:[#allocation3 + %s365]]
            %v367 = vstv %s366
            %vm368 = vcmp.eq.s32.totalorder %v226, %v367
            %vm369 = vmor %vm364, %vm368
            %v370 = vsel %vm369, 1, %v329
          $region60: #{tpu_custom_call.1} parent=54 // loop_footer
            %s328 = sadd.s32 1, %s324
          $region61: #{tpu_custom_call.1} parent=54 // loop_footer_branch
            %323 = sbr.rel target = $region57
          $region62: #{tpu_custom_call.1} parent=54 // loop_exit
            _
          %371 = vst [vmem:[%s220] sm:$0xff] %v329
        $region55: #{tpu_custom_call.1} parent=27 // pred_fallthru
          _
        %s372 = sand.u32 %s107, 1
        %s373 = scalar_lea.sflag [#allocation8], %s372
        %s374 = sand.u32 %s107, 1
        %s375 = smul.addr %s374, 8
        %s376 = scalar_lea.vmem [#allocation11], %s375
        // Predicated region
        $region63: #{tpu_custom_call.1} parent=27 // pred_check
          %p377 = pneg %p117
        $region64: #{tpu_custom_call.1} parent=27 // pred_check_branch
          %379 = sbr.rel (%p377) target = $region66
        $region65: #{tpu_custom_call.1} parent=27 // pred_region
          %s381 = ssub.s32 128, 128
          %382 = vsyncadd %s373, %s381
          %s383 = smul.addr %s39, 128
          %s384 = scalar_lea.hbm %s5, %s383
          %s386 = sshll.u32 %s376, 4
          %s387 = int_to_ptr.vmem [resolvable:$true] %s386
          %389 = dma.vmem_to_hbm [thread:$0]  %s387, 128, %s384, %s373
        $region66: #{tpu_custom_call.1} parent=27 // pred_fallthru
          _
      $region28: #{tpu_custom_call.1} parent=5 // pred_fallthru
        _
      %p390 = scmp.le.s32.totalorder 2, %s30
      // Predicated region
      $region67: #{tpu_custom_call.1} parent=5 // pred_check
        %p391 = pneg %p390
      $region68: #{tpu_custom_call.1} parent=5 // pred_check_branch
        %393 = sbr.rel (%p391) target = $region70
      $region69: #{tpu_custom_call.1} parent=5 // pred_region
        %s394 = ssub.s32 %s30, 2
        // Predicated region
        $region71: #{tpu_custom_call.1} parent=69 // pred_check
          %p395 = pneg %p123
        $region72: #{tpu_custom_call.1} parent=69 // pred_check_branch
          %397 = sbr.rel (%p395) target = $region74
        $region73: #{tpu_custom_call.1} parent=69 // pred_region
          %s398 = sand.u32 %s108, 1
          %s399 = scalar_lea.sflag [#allocation8], %s398
          %s400 = sand.u32 %s108, 1
          %s401 = smul.addr %s400, 8
          %s402 = scalar_lea.vmem [#allocation11], %s401
          %403 = dma.done %s399, 128
        $region74: #{tpu_custom_call.1} parent=69 // pred_fallthru
          _
      $region70: #{tpu_custom_call.1} parent=5 // pred_fallthru
        _
    $region6: #{tpu_custom_call.1} parent=1 // loop_footer
      %s34 = sadd.s32 1, %s30
    $region7: #{tpu_custom_call.1} parent=1 // loop_footer_branch
      %29 = sbr.rel target = $region3
    $region8: #{tpu_custom_call.1} parent=1 // loop_exit
      _
    %404 = vsyncpa [#allocation7], 1
    %s405 = scalar_lea.sflag [#allocation7], 1
    %406 = vsyncpa %s405, 1
    %407 = vsyncpa [#allocation10], 1
    %s408 = scalar_lea.sflag [#allocation10], 1
    %409 = vsyncpa %s408, 1
    %410 = vsyncpa [#allocation8], 1
    %s411 = scalar_lea.sflag [#allocation8], 1
    %412 = vsyncpa %s411, 1

</llo_original>
